<compile_context>
chip_gen: v6e
topology: v6e:2x2x1
jax: 0.10.0
libtpu: 0.0.40
codegen_flags: <defaults>
</compile_context>

<pallas_src>
import functools

import jax
import jax.numpy as jnp
from jax import lax
from jax.experimental import pallas as pl
from jax.experimental.pallas import tpu as pltpu


def _mean_pool_kernel(x_ref, len_ref, out_ref, acc_ref, *, seq_len, seq_tile):
    """Grid = (lane_blocks, seq_blocks); sequence (reduction) axis is last.

    x_ref   : (seq_tile, lane_tile) tile of the (S, B*H) input          (VMEM)
    len_ref : (1, lane_tile) float32 lengths broadcast over H           (VMEM)
    out_ref : (1, lane_tile) float32 output block                       (VMEM)
    acc_ref : (8, lane_tile) float32 scratch accumulator                (VMEM)
    """
    k = pl.program_id(1)

    @pl.when(k == 0)
    def _():
        acc_ref[...] = jnp.zeros_like(acc_ref)

    x = x_ref[...]

    # Ragged S: mask the tail rows of the final (partial) sequence block
    # in-kernel instead of padding the HBM tensor wrapper-side.
    # Static no-op when seq_tile divides S.
    if seq_len % seq_tile != 0:
        row = k * seq_tile + lax.broadcasted_iota(jnp.int32, x.shape, 0)
        x = jnp.where(row < seq_len, x, jnp.zeros_like(x))

    # Hot loop: pure-VPU slab adds into the (8, lane) f32 accumulator — no
    # cross-sublane reduce per step, f32 accumulation without a full-tile copy.
    if seq_tile % 8 == 0:
        acc_ref[...] += jnp.sum(
            x.reshape(seq_tile // 8, 8, x.shape[-1]), axis=0, dtype=jnp.float32)
    else:
        # Only reachable when seq_tile == S (single small block, n_seq == 1).
        acc_ref[0:1, :] = acc_ref[0:1, :] + jnp.sum(
            x, axis=0, keepdims=True, dtype=jnp.float32)

    @pl.when(k == pl.num_programs(1) - 1)
    def _():
        # One 8 -> 1 cross-sublane (XLU) reduce per output block, then the same
        # true divide as the PyTorch baseline (0-length -> inf/nan, like torch).
        total = jnp.sum(acc_ref[...], axis=0, keepdims=True)
        out_ref[...] = total / len_ref[...]


def _sublane_multiple(dtype):
    # Minimum second-minor tile: 8 for f32, 16 for bf16, 32 for int8/fp8.
    return max(8, 32 // jnp.dtype(dtype).itemsize)


def _pick_lane_tile(bh):
    """Largest multiple of 128 dividing B*H, capped so blocks stay modest and
    there are >= 2 lane blocks when possible (v7x has 2 TensorCores/chip)."""
    if bh % 128 != 0:
        return bh                      # ragged lane count: single full block
    cap = max(128, min(bh // 2, 2048))
    lane_tile = 128
    t = 256
    while t <= cap:
        if bh % t == 0:
            lane_tile = t
        t += 128
    return lane_tile


def encoder_baseline(sent, sent_l, *, seq_tile=None, lane_tile=None,
                     vmem_budget_bytes=None):
    """sent: (S, B, H), sent_l: (B,) -> (B, H) f32 = sum(sent, axis=0) / len."""
    S, B, H = sent.shape
    BH = B * H
    itemsize = jnp.dtype(sent.dtype).itemsize
    sub = _sublane_multiple(sent.dtype)

    # Lane-dense 2-D layout: contiguous collapse (free), unfolded for free after.
    x = sent.reshape(S, BH)
    lenf = jnp.repeat(sent_l.astype(jnp.float32), H).reshape(1, BH)

    if lane_tile is None:
        lane_tile = _pick_lane_tile(BH)
    assert BH % lane_tile == 0, "lane_tile must divide B*H"
    n_lane = BH // lane_tile

    # Budget for the double-buffered input stream (the only large VMEM user).
    if vmem_budget_bytes is None:
        vmem_budget_bytes = 16 * 1024 * 1024
    if seq_tile is None:
        raw = max(sub, vmem_budget_bytes // (2 * lane_tile * itemsize))
        if raw >= S:
            seq_tile = S                          # whole sequence in one block
        else:
            seq_tile = max(sub, (raw // sub) * sub)
    assert seq_tile <= S and (seq_tile == S or seq_tile % sub == 0), (
        "seq_tile must equal S or be a multiple of the dtype sublane tile")
    n_seq = pl.cdiv(S, seq_tile)

    # Explicit scoped-VMEM limit derived from the actual tiling (don't rely on
    # per-generation defaults: v5e scoped default 16 MiB, v7x physical 64 MiB).
    est = (2 * seq_tile * lane_tile * itemsize       # double-buffered input
           + 8 * lane_tile * 4                       # accumulator scratch
           + 4 * lane_tile * 4                       # len + out blocks
           + (1 << 20))
    vmem_limit_bytes = int(min(max(est + (4 << 20), 32 << 20), 48 << 20))

    kernel = functools.partial(_mean_pool_kernel, seq_len=S, seq_tile=seq_tile)

    out = pl.pallas_call(
        kernel,
        out_shape=jax.ShapeDtypeStruct((1, BH), jnp.float32),
        grid_spec=pltpu.PrefetchScalarGridSpec(
            num_scalar_prefetch=0,
            grid=(n_lane, n_seq),
            in_specs=[
                pl.BlockSpec((seq_tile, lane_tile), lambda j, k: (k, j)),
                pl.BlockSpec((1, lane_tile), lambda j, k: (0, j)),
            ],
            out_specs=pl.BlockSpec((1, lane_tile), lambda j, k: (0, j)),
            scratch_shapes=[pltpu.VMEM((8, lane_tile), jnp.float32)],
        ),
        compiler_params=pltpu.CompilerParams(
            # Lane blocks are independent -> shard across TensorCores (v7x);
            # the sequence reduction stays last and "arbitrary".
            dimension_semantics=("parallel", "arbitrary"),
            vmem_limit_bytes=vmem_limit_bytes,
        ),
    )(x, lenf)

    return out.reshape(B, H)


def _reference(sent, sent_l):
    return jnp.sum(sent, axis=0) / sent_l.astype(jnp.float32).reshape(-1, 1)


if __name__ == "__main__":
    key = jax.random.PRNGKey(0)
    k1, k2, k3, k4, k5, k6 = jax.random.split(key, 6)

    # Case 1: small H (B*H = 64 < 128): single lane block, single seq block.
    S, B, H = 8, 2, 32
    sent = jax.random.normal(k1, (S, B, H), dtype=jnp.float32)
    sent_l = jax.random.randint(k2, (B,), minval=1, maxval=S + 1, dtype=jnp.int32)
    out = jax.block_until_ready(encoder_baseline(sent, sent_l))
    ref = _reference(sent, sent_l)
    assert out.shape == (B, H)
    assert jnp.allclose(out, ref, atol=1e-5, rtol=1e-5), "case1 mismatch"

    # Case 2: B*H multiple of 128 -> 2 parallel lane blocks; ragged S with a
    # forced small seq_tile -> multi-step reduction with in-kernel tail mask.
    S2, B2, H2 = 20, 2, 128
    sent2 = jax.random.normal(k3, (S2, B2, H2), dtype=jnp.float32)
    sent_l2 = jax.random.randint(k4, (B2,), minval=1, maxval=S2 + 1, dtype=jnp.int32)
    out2 = jax.block_until_ready(encoder_baseline(sent2, sent_l2, seq_tile=8))
    ref2 = _reference(sent2, sent_l2)
    assert out2.shape == (B2, H2)
    assert jnp.allclose(out2, ref2, atol=1e-5, rtol=1e-5), "case2 mismatch"

    # Case 3: S < 8 (full-dim, non-multiple-of-8 seq block path), B=4, H=64.
    S3, B3, H3 = 7, 4, 64
    sent3 = jax.random.normal(k5, (S3, B3, H3), dtype=jnp.float32)
    sent_l3 = jax.random.randint(k6, (B3,), minval=1, maxval=S3 + 1, dtype=jnp.int32)
    out3 = jax.block_until_ready(encoder_baseline(sent3, sent_l3))
    ref3 = _reference(sent3, sent_l3)
    assert out3.shape == (B3, H3)
    assert jnp.allclose(out3, ref3, atol=1e-5, rtol=1e-5), "case3 mismatch"

    print("KERNEL_OK")
</pallas_src>

<mosaic_0001>
module attributes {stable_mosaic.version = 11 : i64} {
  func.func @_mean_pool_kernel(%arg0: i32, %arg1: i32, %arg2: memref<8x64xf32, #tpu.memory_space<vmem>>, %arg3: memref<1x64xf32, #tpu.memory_space<vmem>>, %arg4: memref<1x64xf32, #tpu.memory_space<vmem>>, %arg5: memref<8x64xf32, #tpu.memory_space<vmem>>) attributes {dimension_semantics = [#tpu.dimension_semantics<parallel>, #tpu.dimension_semantics<arbitrary>], iteration_bounds = array<i64: 1, 1>, scalar_prefetch = 0 : i64, scratch_operands = 1 : i64, tpu.core_type = #tpu.core_type<tc>, window_params = [{transform_indices = @transform_0, window_bounds = array<i64: 8, 64>}, {transform_indices = @transform_1, window_bounds = array<i64: 1, 64>}, {transform_indices = @transform_2, window_bounds = array<i64: 1, 64>}]} {
    %c0_i32 = arith.constant 0 : i32
    %0 = arith.cmpi eq, %arg1, %c0_i32 : i32
    %1 = arith.extui %0 : i1 to i32
    %c0_i32_0 = arith.constant 0 : i32
    %2 = arith.cmpi ne, %1, %c0_i32_0 : i32
    scf.if %2 {
      %cst_8 = arith.constant 0.000000e+00 : f32
      %12 = vector.broadcast %cst_8 : f32 to vector<8x64xf32>
      %c0_9 = arith.constant 0 : index
      %c0_10 = arith.constant 0 : index
      %13 = vector.load %arg5[%c0_9, %c0_10] : memref<8x64xf32, #tpu.memory_space<vmem>>, vector<8x64xf32>
      tpu.vector_store %arg5[%c0_9, %c0_10], %12 {strides = array<i32>} : memref<8x64xf32, #tpu.memory_space<vmem>>, vector<8x64xf32>,
    } else {
    }
    %c0 = arith.constant 0 : index
    %c0_1 = arith.constant 0 : index
    %3 = vector.load %arg2[%c0, %c0_1] : memref<8x64xf32, #tpu.memory_space<vmem>>, vector<8x64xf32>
    %c0_2 = arith.constant 0 : index
    %c0_3 = arith.constant 0 : index
    %4 = vector.load %arg5[%c0_2, %c0_3] : memref<8x64xf32, #tpu.memory_space<vmem>>, vector<8x64xf32>
    %5 = vector.shape_cast %3 : vector<8x64xf32> to vector<1x8x64xf32>
    %cst = arith.constant dense<0.000000e+00> : vector<8x64xf32>
    %6 = vector.multi_reduction <add>, %5, %cst [0] : vector<1x8x64xf32> to vector<8x64xf32>
    %7 = arith.addf %4, %6 : vector<8x64xf32>
    %c0_4 = arith.constant 0 : index
    %c0_5 = arith.constant 0 : index
    %8 = vector.load %arg5[%c0_4, %c0_5] : memref<8x64xf32, #tpu.memory_space<vmem>>, vector<8x64xf32>
    tpu.vector_store %arg5[%c0_4, %c0_5], %7 {strides = array<i32>} : memref<8x64xf32, #tpu.memory_space<vmem>>, vector<8x64xf32>,
    %c0_i32_6 = arith.constant 0 : i32
    %9 = arith.cmpi eq, %arg1, %c0_i32_6 : i32
    %10 = arith.extui %9 : i1 to i32
    %c0_i32_7 = arith.constant 0 : i32
    %11 = arith.cmpi ne, %10, %c0_i32_7 : i32
    scf.if %11 {
      %c0_8 = arith.constant 0 : index
      %c0_9 = arith.constant 0 : index
      %12 = vector.load %arg5[%c0_8, %c0_9] : memref<8x64xf32, #tpu.memory_space<vmem>>, vector<8x64xf32>
      %cst_10 = arith.constant dense<0.000000e+00> : vector<64xf32>
      %13 = vector.multi_reduction <add>, %12, %cst_10 [0] : vector<8x64xf32> to vector<64xf32>
      %14 = vector.shape_cast %13 : vector<64xf32> to vector<1x64xf32>
      %c0_11 = arith.constant 0 : index
      %c0_12 = arith.constant 0 : index
      %15 = vector.load %arg3[%c0_11, %c0_12] : memref<1x64xf32, #tpu.memory_space<vmem>>, vector<1x64xf32>
      %16 = arith.divf %14, %15 : vector<1x64xf32>
      %c0_13 = arith.constant 0 : index
      %c0_14 = arith.constant 0 : index
      %17 = vector.load %arg4[%c0_13, %c0_14] : memref<1x64xf32, #tpu.memory_space<vmem>>, vector<1x64xf32>
      tpu.vector_store %arg4[%c0_13, %c0_14], %16 {strides = array<i32>} : memref<1x64xf32, #tpu.memory_space<vmem>>, vector<1x64xf32>,
    } else {
    }
    return
  }
  func.func @transform_0(%arg0: i32, %arg1: i32) -> (i32, i32) {
    %c0_i32 = arith.constant 0 : i32
    return %arg1, %arg0 : i32, i32
  }
  func.func @transform_1(%arg0: i32, %arg1: i32) -> (i32, i32) {
    %c0_i32 = arith.constant 0 : i32
    %c0_i32_0 = arith.constant 0 : i32
    return %c0_i32, %arg0 : i32, i32
  }
  func.func @transform_2(%arg0: i32, %arg1: i32) -> (i32, i32) {
    %c0_i32 = arith.constant 0 : i32
    %c0_i32_0 = arith.constant 0 : i32
    return %c0_i32, %arg0 : i32, i32
  }
}

</mosaic_0001>

<llo_original>
// kernel: tpu_custom_call.1
$region0: #{tpu_custom_call.1}
  #allocation0 [shape = 'u32[]', space=smem, size = 0x4, offset = 0x4, fixed_abs, tag = 'smem constant byte address 0x4 - core index']
  #allocation1 [shape = 'u32[144,128]{1,0:T(1,128)}', space=vmem, size = 0x12000, scoped, tag = 'internal scratch']
  #allocation2 [shape = 'f32[8,64]{1,0:T(8,128)}', space=vmem, size = 0x1000, scoped, tag = 'scratch operand']
  %s0 = inlined_call_operand.hbm [shape: f32[8,64], index: 0, kind: input, shape index: {}]
  %s1 = inlined_call_operand.vmem [shape: f32[1,64], index: 1, kind: input, shape index: {}]
  %s2 = inlined_call_operand.hbm [shape: f32[1,64], index: 2, kind: output, shape index: {}]
  %s3 = sld [smem:[#allocation0]]
  $region30: #{tpu_custom_call.1} parent=0
    _
  %s5 = ssub.s32 1, %s3
  %s6 = scalar_select 0, %s5, %s3
  $region1: #{tpu_custom_call.1} parent=0
    #allocation3 [shape = 'u8[4096]{0}', space=vmem, size = 0x1000, scoped, tag = 'input window, operand 0, single buffered']
    #allocation4 [shape = 's32[1]{0}', space=sflag, size = 0x4, scoped, tag = 'scoped memory for tpu_custom_call.1']
    #allocation5 [shape = 's32[1]{0}', space=sflag, size = 0x4, scoped, tag = 'scoped memory for tpu_custom_call.1']
    #allocation6 [shape = 'u8[512]{0}', space=vmem, size = 0x400, scoped, tag = 'output window, operand 0, single buffered']
    %7 = vsyncpa [#allocation4], 0
    %8 = vsyncpa [#allocation5], 0
    // Predicated region
    $region2: #{tpu_custom_call.1} parent=1 // pred_check
      _
    $region3: #{tpu_custom_call.1} parent=1 // pred_check_branch
      %10 = sbr.rel (0) target = $region5
    $region4: #{tpu_custom_call.1} parent=1 // pred_region
      %s12 = ssub.s32 128, 128
      %13 = vsyncadd [#allocation4], %s12
      %s15 = sshll.u32 [#allocation3], 4
      %s16 = int_to_ptr.vmem [resolvable:$true] %s15
      %18 = dma.hbm_to_vmem [thread:$0]  %s0, 128, %s16, [#allocation4]
    $region5: #{tpu_custom_call.1} parent=1 // pred_fallthru
      _
    // Predicated region
    $region6: #{tpu_custom_call.1} parent=1 // pred_check
      _
    $region7: #{tpu_custom_call.1} parent=1 // pred_check_branch
      %20 = sbr.rel (0) target = $region9
    $region8: #{tpu_custom_call.1} parent=1 // pred_region
      _
    $region9: #{tpu_custom_call.1} parent=1 // pred_fallthru
      _
    // Predicated region
    $region10: #{tpu_custom_call.1} parent=1 // pred_check
      _
    $region11: #{tpu_custom_call.1} parent=1 // pred_check_branch
      %22 = sbr.rel (0) target = $region13
    $region12: #{tpu_custom_call.1} parent=1 // pred_region
      %23 = dma.done [#allocation4], 128
    $region13: #{tpu_custom_call.1} parent=1 // pred_fallthru
      _
    %p24 = scmp.eq.s32.totalorder 0, 0
    // Predicated region
    $region14: #{tpu_custom_call.1} parent=1 // pred_check
      %p25 = pneg %p24
    $region15: #{tpu_custom_call.1} parent=1 // pred_check_branch
      %27 = sbr.rel (%p25) target = $region17
    $region16: #{tpu_custom_call.1} parent=1 // pred_region
      %vm28 = vcmask 523264
      %29 = vst.msk [vmem:[#allocation2] sm:$0xff] %vm28, 0.0
    $region17: #{tpu_custom_call.1} parent=1 // pred_fallthru
      _
    %v30 = vld [vmem:[#allocation3] sm:$0xff]
    %v31 = vld [vmem:[#allocation2] sm:$0xff]
    %v32 = vadd.f32 %v30, 0.0
    %v33 = vadd.f32 %v31, %v32
    %vm34 = vcmask 523264
    %35 = vst.msk [vmem:[#allocation2] sm:$0xff] %vm34, %v33
    // Predicated region
    $region18: #{tpu_custom_call.1} parent=1 // pred_check
      %p36 = pneg %p24
    $region19: #{tpu_custom_call.1} parent=1 // pred_check_branch
      %38 = sbr.rel (%p36) target = $region21
    $region20: #{tpu_custom_call.1} parent=1 // pred_region
      %v39 = vld [vmem:[#allocation2] sm:$0xff]
      %v40 = vsel %vm34, %v39, 0.0
      %v41 = vrot.slane %v40, 4
      %v42 = vadd.f32 %v40, %v41
      %v43 = vrot.slane %v42, 2
      %v44 = vadd.f32 %v42, %v43
      %v45 = vrot.slane %v44, 1
      %v46 = vadd.f32 %v44, %v45
      %v47 = vld [vmem:[%s1] sm:$0x1]
      %v48 = vrcp.pop %v47
      %v49 = vmul.f32 %v46, %v48
      %vm50 = vcmask 516096
      %51 = vst.msk [vmem:[#allocation6] sm:$0x1] %vm50, %v49
    $region21: #{tpu_custom_call.1} parent=1 // pred_fallthru
      _
    // Predicated region
    $region22: #{tpu_custom_call.1} parent=1 // pred_check
      _
    $region23: #{tpu_custom_call.1} parent=1 // pred_check_branch
      %53 = sbr.rel (0) target = $region25
    $region24: #{tpu_custom_call.1} parent=1 // pred_region
      %s55 = ssub.s32 16, 16
      %56 = vsyncadd [#allocation5], %s55
      %s58 = sshll.u32 [#allocation6], 4
      %s59 = int_to_ptr.vmem [resolvable:$true] %s58
      %61 = dma.vmem_to_hbm [thread:$0]  %s59, 16, %s2, [#allocation5]
    $region25: #{tpu_custom_call.1} parent=1 // pred_fallthru
      _
    // Predicated region
    $region26: #{tpu_custom_call.1} parent=1 // pred_check
      _
    $region27: #{tpu_custom_call.1} parent=1 // pred_check_branch
      %63 = sbr.rel (0) target = $region29
    $region28: #{tpu_custom_call.1} parent=1 // pred_region
      %64 = dma.done [#allocation5], 16
    $region29: #{tpu_custom_call.1} parent=1 // pred_fallthru
      _
    %65 = vsyncpa [#allocation4], 1
    %66 = vsyncpa [#allocation5], 1

</llo_original>
